<compile_context>
chip_gen: v7x
topology: tpu7x:2x2x1
jax: 0.10.0
libtpu: 0.0.40
codegen_flags: <defaults>
</compile_context>

<pallas_src>
import jax
import jax.numpy as jnp
from jax.experimental import pallas as pl
from jax.experimental.pallas import tpu as pltpu


def _ptmodule_kernel(x_ref, o_ref):
    # (((x + 2) * 3 - 5) / 2) + 0 + 1  ==  1.5 * x + 1.5   (compute in f32)
    x = x_ref[...].astype(jnp.float32)
    o_ref[...] = (x * 1.5 + 1.5).astype(o_ref.dtype)


# Lane-dense candidate widths (multiples of 128), largest first.  Picking one
# that divides the element count exactly makes flatten/reshape metadata-only.
_LANE_CANDIDATES = (1024, 896, 768, 640, 512, 384, 256, 128)


def _hw_budgets():
    """Per-generation block / scoped-VMEM budgets."""
    try:
        vmem_phys = int(pltpu.get_tpu_info().vmem_capacity_bytes)
    except Exception:
        vmem_phys = 64 << 20  # conservative fallback: v7x per-TC VMEM
    # ~4 MiB blocks (review-recommended); never more than 1/16 of physical
    # VMEM so double-buffered in+out stays far below the scoped limit.
    block_bytes = max(2 << 20, min(4 << 20, vmem_phys // 16))
    # Raise the scoped VMEM limit above v5e's 16 MiB default; cap at half
    # of physical VMEM (32 MiB on v7x, 64 MiB on v5e/v6e).
    vmem_limit = min(max(32 << 20, vmem_phys // 2), 64 << 20)
    return block_bytes, vmem_limit


def ptmodule_forward(x, donate_input: bool = False):
    """PtModule forward pass (elementwise 1.5*x + 1.5) as a Pallas TPU kernel.

    Accepts any-rank input.  Floating inputs keep their dtype; integer inputs
    are promoted to float32 (PyTorch true-division semantics).
    Set donate_input=True only if the caller no longer needs `x`.
    """
    orig_shape = x.shape
    in_dtype = x.dtype
    out_dtype = in_dtype if jnp.issubdtype(in_dtype, jnp.floating) else jnp.float32
    n = int(x.size)

    if n == 0:
        return x.astype(out_dtype)

    in_item = jnp.dtype(in_dtype).itemsize
    out_item = jnp.dtype(out_dtype).itemsize
    # Packed-sublane granule (8 for 32-bit, 16 for 16-bit, 32 for 8-bit).
    sublane = max(8, 32 // min(in_item, out_item))

    block_bytes, vmem_limit = _hw_budgets()

    # --- choose lane width; avoid padding whenever an exact divisor exists ---
    lanes = None
    for cand in _LANE_CANDIDATES:
        if n % cand == 0:
            lanes = cand
            break
    needs_pad = lanes is None
    if needs_pad:
        lanes = 1024  # lane-dense fallback; pad < 1024 elements

    rows = pl.cdiv(n, lanes)          # == n // lanes in the exact case
    padded_n = rows * lanes

    xf = x.reshape(-1)
    if needs_pad:
        xf = jnp.pad(xf, (0, padded_n - n))
    x2d = xf.reshape(rows, lanes)

    # --- row tiling: cdiv grid, Pallas masks the partial last block ---
    tile_r = max(sublane, block_bytes // (lanes * max(in_item, out_item)))
    tile_r = max(sublane, (tile_r // sublane) * sublane)
    if tile_r >= rows:
        tile_r = rows                 # single block == full array dims
        grid_r = 1
    else:
        grid_r = pl.cdiv(rows, tile_r)

    compiler_params = pltpu.CompilerParams(
        dimension_semantics=("parallel",),
        vmem_limit_bytes=vmem_limit,
        # Let XLA fuse the pad/reshape producer into the operand instead of
        # materializing a separate padded HBM array (fallback path only).
        allow_input_fusion=[True] if needs_pad else None,
    )

    extra_kwargs = {}
    if donate_input and not needs_pad and in_dtype == out_dtype:
        extra_kwargs["input_output_aliases"] = {0: 0}

    out2d = pl.pallas_call(
        _ptmodule_kernel,
        out_shape=jax.ShapeDtypeStruct((rows, lanes), out_dtype),
        grid_spec=pl.GridSpec(
            grid=(grid_r,),
            in_specs=[pl.BlockSpec((tile_r, lanes), lambda i: (i, 0))],
            out_specs=pl.BlockSpec((tile_r, lanes), lambda i: (i, 0)),
        ),
        compiler_params=compiler_params,
        cost_estimate=pl.CostEstimate(
            flops=2 * n,
            transcendentals=0,
            bytes_accessed=n * (in_item + out_item),
        ),
        **extra_kwargs,
    )(x2d)

    out = out2d.reshape(-1)
    if needs_pad:
        out = out[:n]
    return out.reshape(orig_shape)


if __name__ == "__main__":
    key = jax.random.PRNGKey(0)
    # Small NCHW-like input consistent with an elementwise module.
    x = jax.random.normal(key, (2, 4, 16, 16), dtype=jnp.float32)

    y = ptmodule_forward(x)
    jax.block_until_ready(y)

    # Reference check in plain JAX (original op chain).
    ref = (((x + 2.0) * 3.0 - 5.0) / 2.0) + 0.0 + 1.0
    assert y.shape == x.shape and y.dtype == x.dtype
    assert jnp.allclose(y, ref, atol=1e-5, rtol=1e-5)

    print("KERNEL_OK")
</pallas_src>

<mosaic_0001>
module attributes {stable_mosaic.version = 11 : i64} {
  func.func @_ptmodule_kernel(%arg0: i32, %arg1: memref<2x1024xf32, #tpu.memory_space<vmem>>, %arg2: memref<2x1024xf32, #tpu.memory_space<vmem>>) attributes {dimension_semantics = [#tpu.dimension_semantics<parallel>], iteration_bounds = array<i64: 1>, scalar_prefetch = 0 : i64, scratch_operands = 0 : i64, tpu.core_type = #tpu.core_type<tc>, window_params = [{transform_indices = @transform_0, window_bounds = array<i64: 2, 1024>}, {transform_indices = @transform_1, window_bounds = array<i64: 2, 1024>}]} {
    %c0 = arith.constant 0 : index
    %c0_0 = arith.constant 0 : index
    %0 = vector.load %arg1[%c0, %c0_0] : memref<2x1024xf32, #tpu.memory_space<vmem>>, vector<2x1024xf32>
    %cst = arith.constant 1.500000e+00 : f32
    %1 = vector.broadcast %cst : f32 to vector<2x1024xf32>
    %2 = arith.mulf %0, %1 : vector<2x1024xf32>
    %cst_1 = arith.constant 1.500000e+00 : f32
    %3 = vector.broadcast %cst_1 : f32 to vector<2x1024xf32>
    %4 = arith.addf %2, %3 : vector<2x1024xf32>
    %c0_2 = arith.constant 0 : index
    %c0_3 = arith.constant 0 : index
    %5 = vector.load %arg2[%c0_2, %c0_3] : memref<2x1024xf32, #tpu.memory_space<vmem>>, vector<2x1024xf32>
    tpu.vector_store %arg2[%c0_2, %c0_3], %4 {strides = array<i32>} : memref<2x1024xf32, #tpu.memory_space<vmem>>, vector<2x1024xf32>,
    return
  }
  func.func @transform_0(%arg0: i32) -> (i32, i32) {
    %c0_i32 = arith.constant 0 : i32
    %c0_i32_0 = arith.constant 0 : i32
    return %arg0, %c0_i32 : i32, i32
  }
  func.func @transform_1(%arg0: i32) -> (i32, i32) {
    %c0_i32 = arith.constant 0 : i32
    %c0_i32_0 = arith.constant 0 : i32
    return %arg0, %c0_i32 : i32, i32
  }
}

</mosaic_0001>

<llo_original>
// kernel: tpu_custom_call.1
$region0: #{tpu_custom_call.1}
  #allocation0 [shape = 'u32[]', space=smem, size = 0x4, offset = 0x4, fixed_abs, tag = 'smem constant byte address 0x4 - core index']
  #allocation1 [shape = 'u32[144,128]{1,0:T(1,128)}', space=vmem, size = 0x12000, scoped, tag = 'internal scratch']
  %s0 = inlined_call_operand.hbm [shape: f32[2,1024], index: 0, kind: input, shape index: {}]
  %s1 = inlined_call_operand.hbm [shape: f32[2,1024], index: 1, kind: output, shape index: {}]
  %s2 = sld [smem:[#allocation0]]
  $region18: #{tpu_custom_call.1} parent=0
    _
  %s4 = ssub.s32 1, %s2
  %s5 = scalar_select 0, %s4, %s2
  $region1: #{tpu_custom_call.1} parent=0
    #allocation2 [shape = 'u8[8192]{0}', space=vmem, size = 0x2000, scoped, tag = 'input window, operand 0, single buffered']
    #allocation3 [shape = 's32[1]{0}', space=sflag, size = 0x4, scoped, tag = 'scoped memory for tpu_custom_call.1']
    #allocation4 [shape = 's32[1]{0}', space=sflag, size = 0x4, scoped, tag = 'scoped memory for tpu_custom_call.1']
    #allocation5 [shape = 'u8[8192]{0}', space=vmem, size = 0x2000, scoped, tag = 'output window, operand 0, single buffered']
    %6 = vsyncpa [#allocation3], 0
    %7 = vsyncpa [#allocation4], 0
    // Predicated region
    $region2: #{tpu_custom_call.1} parent=1 // pred_check
      _
    $region3: #{tpu_custom_call.1} parent=1 // pred_check_branch
      %9 = sbr.rel (0) target = $region5
    $region4: #{tpu_custom_call.1} parent=1 // pred_region
      %s11 = ssub.s32 256, 256
      %12 = vsyncadd [#allocation3], %s11
      %s14 = sshll.u32 [#allocation2], 4
      %s15 = int_to_ptr.vmem [resolvable:$true] %s14
      %17 = dma.hbm_to_vmem [thread:$0]  %s0, 256, %s15, [#allocation3]
    $region5: #{tpu_custom_call.1} parent=1 // pred_fallthru
      _
    // Predicated region
    $region6: #{tpu_custom_call.1} parent=1 // pred_check
      _
    $region7: #{tpu_custom_call.1} parent=1 // pred_check_branch
      %19 = sbr.rel (0) target = $region9
    $region8: #{tpu_custom_call.1} parent=1 // pred_region
      %20 = dma.done [#allocation3], 256
    $region9: #{tpu_custom_call.1} parent=1 // pred_fallthru
      _
    %v21 = vld [vmem:[#allocation2] sm:$0xff]
    %v22 = vld [vmem:[#allocation2 + $0x8] sm:$0xff]
    %v23 = vmul.f32 %v21, 1.5
    %v24 = vmul.f32 %v22, 1.5
    %v25 = vadd.f32 %v23, 1.5
    %v26 = vadd.f32 %v24, 1.5
    %27 = vst [vmem:[#allocation5] sm:$0xff] %v25
    %28 = vst [vmem:[#allocation5 + $0x8] sm:$0xff] %v26
    // Predicated region
    $region10: #{tpu_custom_call.1} parent=1 // pred_check
      _
    $region11: #{tpu_custom_call.1} parent=1 // pred_check_branch
      %30 = sbr.rel (0) target = $region13
    $region12: #{tpu_custom_call.1} parent=1 // pred_region
      %s32 = ssub.s32 256, 256
      %33 = vsyncadd [#allocation4], %s32
      %s35 = sshll.u32 [#allocation5], 4
      %s36 = int_to_ptr.vmem [resolvable:$true] %s35
      %38 = dma.vmem_to_hbm [thread:$0]  %s36, 256, %s1, [#allocation4]
    $region13: #{tpu_custom_call.1} parent=1 // pred_fallthru
      _
    // Predicated region
    $region14: #{tpu_custom_call.1} parent=1 // pred_check
      _
    $region15: #{tpu_custom_call.1} parent=1 // pred_check_branch
      %40 = sbr.rel (0) target = $region17
    $region16: #{tpu_custom_call.1} parent=1 // pred_region
      %41 = dma.done [#allocation4], 256
    $region17: #{tpu_custom_call.1} parent=1 // pred_fallthru
      _
    %42 = vsyncpa [#allocation3], 1
    %43 = vsyncpa [#allocation4], 1

</llo_original>
